<compile_context>
chip_gen: v7x
topology: tpu7x:2x2x1
jax: 0.10.0
libtpu: 0.0.40
codegen_flags: <defaults>
</compile_context>

<pallas_src>
import functools

import jax
import jax.numpy as jnp
from jax.experimental import pallas as pl
from jax.experimental.pallas import tpu as pltpu


def _fused_mlp_kernel(acts, x_ref, *refs):
    """Chained  h <- W_T @ h + b  (+ tanh) layers on the current batch tile.

    Layout: activations are (features, tile_m)  (batch on the lane axis).
    refs = (w0_T, b0, w1_T, b1, ..., out_ref)
    """
    out_ref = refs[-1]
    param_refs = refs[:-1]
    num_layers = len(param_refs) // 2

    h = x_ref[...].astype(jnp.float32)                         # (d_in, tile_m)
    for i in range(num_layers):
        wt = param_refs[2 * i][...].astype(jnp.float32)        # (out, in)
        b = param_refs[2 * i + 1][...].astype(jnp.float32)     # (out, 1)
        k = wt.shape[1]
        if k <= 4:
            # Tiny contraction: outer-product accumulate on the VPU, skip the MXU.
            acc = wt[:, 0:1] * h[0:1, :]
            for j in range(1, k):
                acc = acc + wt[:, j:j + 1] * h[j:j + 1, :]
            h = acc + b
        else:
            h = jnp.dot(wt, h, preferred_element_type=jnp.float32) + b
        if acts[i]:
            h = jnp.tanh(h)
    out_ref[...] = h.astype(out_ref.dtype)                     # lane-dense store


def _pick_tile(batch, tile_m):
    """Lane-aligned batch tile; keep >= 2 grid steps when the batch allows (v7x)."""
    padded = pl.cdiv(batch, 128) * 128
    tile = max(128, min(tile_m, padded))
    tile = (tile // 128) * 128
    if padded // tile < 2 and padded >= 256:
        tile = max(128, ((padded // 2) // 128) * 128)
    return tile


def sequential_forward(points, layers, *, tile_m=1024):
    """Apply the sequential stack of (W, b, use_tanh) layers with Pallas.

    points: (batch, d_in) float32
    layers: list of (W (K, N), b (N,), use_tanh: bool)
    returns: (batch, d_out)
    """
    batch, d_in = points.shape
    d_out = layers[-1][0].shape[1]
    acts = tuple(bool(a) for (_, _, a) in layers)

    tile = _pick_tile(batch, tile_m)
    batch_padded = pl.cdiv(batch, tile) * tile
    grid = batch_padded // tile

    # Batch on lanes: x_t is (d_in, batch_padded); padded columns are zero and
    # their outputs are discarded below.
    x_t = jnp.pad(points.T, ((0, 0), (0, batch_padded - batch)))

    # Flattened, pre-transposed params: W_T (out, in), b (out, 1).
    param_arrays = []
    for (w, b, _) in layers:
        param_arrays.append(jnp.asarray(w).T)
        param_arrays.append(jnp.asarray(b).reshape(-1, 1))

    # Constant params: whole arrays resident in VMEM (no per-step double buffering).
    param_spec = pl.BlockSpec(memory_space=pltpu.MemorySpace.VMEM)
    in_specs = [pl.BlockSpec((d_in, tile), lambda i: (0, i))]
    in_specs += [param_spec] * len(param_arrays)
    out_spec = pl.BlockSpec((d_out, tile), lambda i: (0, i))    # lane-dense output

    kernel = functools.partial(_fused_mlp_kernel, acts)

    out_t = pl.pallas_call(
        kernel,
        out_shape=jax.ShapeDtypeStruct((d_out, batch_padded), points.dtype),
        grid_spec=pltpu.PrefetchScalarGridSpec(
            num_scalar_prefetch=0,
            grid=(grid,),
            in_specs=in_specs,
            out_specs=out_spec,
        ),
        compiler_params=pltpu.CompilerParams(
            dimension_semantics=("parallel",)
        ),
    )(x_t, *param_arrays)

    return out_t[:, :batch].T


def _init_layers(key):
    """Deterministic Xavier-ish init for the Sequential([FCN_A, FCN_B]) stack."""
    # (in, out, tanh_after?)
    layer_defs = [
        (2, 32, True),    # ModelA hidden 1
        (32, 32, True),   # ModelA hidden 2
        (32, 16, False),  # ModelA output (linear)
        (16, 32, True),   # ModelB hidden 1
        (32, 1, False),   # ModelB output (linear)
    ]
    layers = []
    for (fan_in, fan_out, act) in layer_defs:
        key, kw, kb = jax.random.split(key, 3)
        scale = jnp.sqrt(2.0 / (fan_in + fan_out)).astype(jnp.float32)
        w = scale * jax.random.normal(kw, (fan_in, fan_out), dtype=jnp.float32)
        b = 0.01 * jax.random.normal(kb, (fan_out,), dtype=jnp.float32)
        layers.append((w, b, act))
    return layers


def _reference_forward(points, layers):
    h = points
    for (w, b, act) in layers:
        h = h @ w + b
        if act:
            h = jnp.tanh(h)
    return h


if __name__ == "__main__":
    key = jax.random.PRNGKey(0)
    key, kx = jax.random.split(key)

    batch, d_in = 300, 2          # ragged batch exercises the padded tail path
    points = jax.random.uniform(kx, (batch, d_in), dtype=jnp.float32)

    layers = _init_layers(key)

    out = sequential_forward(points, layers)
    out = jax.block_until_ready(out)

    ref = _reference_forward(points, layers)
    assert out.shape == (batch, 1)
    assert jnp.allclose(out, ref, atol=1e-5, rtol=1e-4), float(
        jnp.max(jnp.abs(out - ref))
    )

    print("KERNEL_OK")
</pallas_src>

<mosaic_0001>
module attributes {stable_mosaic.version = 11 : i64} {
  func.func @_fused_mlp_kernel(%arg0: i32, %arg1: memref<2x128xf32, #tpu.memory_space<vmem>>, %arg2: memref<32x2xf32, #tpu.memory_space<vmem>>, %arg3: memref<32x1xf32, #tpu.memory_space<vmem>>, %arg4: memref<32x32xf32, #tpu.memory_space<vmem>>, %arg5: memref<32x1xf32, #tpu.memory_space<vmem>>, %arg6: memref<16x32xf32, #tpu.memory_space<vmem>>, %arg7: memref<16x1xf32, #tpu.memory_space<vmem>>, %arg8: memref<32x16xf32, #tpu.memory_space<vmem>>, %arg9: memref<32x1xf32, #tpu.memory_space<vmem>>, %arg10: memref<1x32xf32, #tpu.memory_space<vmem>>, %arg11: memref<1x1xf32, #tpu.memory_space<vmem>>, %arg12: memref<1x128xf32, #tpu.memory_space<vmem>>) attributes {dimension_semantics = [#tpu.dimension_semantics<parallel>], iteration_bounds = array<i64: 3>, scalar_prefetch = 0 : i64, scratch_operands = 0 : i64, tpu.core_type = #tpu.core_type<tc>, window_params = [{transform_indices = @transform_0, window_bounds = array<i64: 2, 128>}, {pipeline_mode = #tpu.pipeline_mode<synchronous>, transform_indices = @transform_1, window_bounds = array<i64: 32, 2>}, {pipeline_mode = #tpu.pipeline_mode<synchronous>, transform_indices = @transform_2, window_bounds = array<i64: 32, 1>}, {pipeline_mode = #tpu.pipeline_mode<synchronous>, transform_indices = @transform_3, window_bounds = array<i64: 32, 32>}, {pipeline_mode = #tpu.pipeline_mode<synchronous>, transform_indices = @transform_4, window_bounds = array<i64: 32, 1>}, {pipeline_mode = #tpu.pipeline_mode<synchronous>, transform_indices = @transform_5, window_bounds = array<i64: 16, 32>}, {pipeline_mode = #tpu.pipeline_mode<synchronous>, transform_indices = @transform_6, window_bounds = array<i64: 16, 1>}, {pipeline_mode = #tpu.pipeline_mode<synchronous>, transform_indices = @transform_7, window_bounds = array<i64: 32, 16>}, {pipeline_mode = #tpu.pipeline_mode<synchronous>, transform_indices = @transform_8, window_bounds = array<i64: 32, 1>}, {pipeline_mode = #tpu.pipeline_mode<synchronous>, transform_indices = @transform_9, window_bounds = array<i64: 1, 32>}, {pipeline_mode = #tpu.pipeline_mode<synchronous>, transform_indices = @transform_10, window_bounds = array<i64: 1, 1>}, {transform_indices = @transform_11, window_bounds = array<i64: 1, 128>}]} {
    %c0 = arith.constant 0 : index
    %c0_0 = arith.constant 0 : index
    %0 = vector.load %arg1[%c0, %c0_0] : memref<2x128xf32, #tpu.memory_space<vmem>>, vector<2x128xf32>
    %c0_1 = arith.constant 0 : index
    %c0_2 = arith.constant 0 : index
    %1 = vector.load %arg2[%c0_1, %c0_2] : memref<32x2xf32, #tpu.memory_space<vmem>>, vector<32x2xf32>
    %c0_3 = arith.constant 0 : index
    %c0_4 = arith.constant 0 : index
    %2 = vector.load %arg3[%c0_3, %c0_4] : memref<32x1xf32, #tpu.memory_space<vmem>>, vector<32x1xf32>
    %3 = vector.extract_strided_slice %1 {offsets = [0, 0], sizes = [32, 1], strides = [1, 1]} : vector<32x2xf32> to vector<32x1xf32>
    %4 = vector.extract_strided_slice %0 {offsets = [0, 0], sizes = [1, 128], strides = [1, 1]} : vector<2x128xf32> to vector<1x128xf32>
    %5 = vector.broadcast %3 : vector<32x1xf32> to vector<32x128xf32>
    %6 = vector.broadcast %4 : vector<1x128xf32> to vector<32x128xf32>
    %7 = arith.mulf %5, %6 : vector<32x128xf32>
    %8 = vector.extract_strided_slice %1 {offsets = [0, 1], sizes = [32, 1], strides = [1, 1]} : vector<32x2xf32> to vector<32x1xf32>
    %9 = vector.extract_strided_slice %0 {offsets = [1, 0], sizes = [1, 128], strides = [1, 1]} : vector<2x128xf32> to vector<1x128xf32>
    %10 = vector.broadcast %8 : vector<32x1xf32> to vector<32x128xf32>
    %11 = vector.broadcast %9 : vector<1x128xf32> to vector<32x128xf32>
    %12 = arith.mulf %10, %11 : vector<32x128xf32>
    %13 = arith.addf %7, %12 : vector<32x128xf32>
    %14 = vector.broadcast %2 : vector<32x1xf32> to vector<32x128xf32>
    %15 = arith.addf %13, %14 : vector<32x128xf32>
    %16 = math.tanh %15 : vector<32x128xf32>
    %c0_5 = arith.constant 0 : index
    %c0_6 = arith.constant 0 : index
    %17 = vector.load %arg4[%c0_5, %c0_6] : memref<32x32xf32, #tpu.memory_space<vmem>>, vector<32x32xf32>
    %c0_7 = arith.constant 0 : index
    %c0_8 = arith.constant 0 : index
    %18 = vector.load %arg5[%c0_7, %c0_8] : memref<32x1xf32, #tpu.memory_space<vmem>>, vector<32x1xf32>
    %cst = arith.constant dense<0.000000e+00> : vector<32x128xf32>
    %19 = tpu.matmul %17, %16, %cst {dimension_numbers = #tpu.dot_dimension_numbers<[1], [0], [0], [1], [0, 0, 1, 1], [], []>} : vector<32x32xf32>, vector<32x128xf32>, vector<32x128xf32> -> vector<32x128xf32>
    %20 = vector.broadcast %18 : vector<32x1xf32> to vector<32x128xf32>
    %21 = arith.addf %19, %20 : vector<32x128xf32>
    %22 = math.tanh %21 : vector<32x128xf32>
    %c0_9 = arith.constant 0 : index
    %c0_10 = arith.constant 0 : index
    %23 = vector.load %arg6[%c0_9, %c0_10] : memref<16x32xf32, #tpu.memory_space<vmem>>, vector<16x32xf32>
    %c0_11 = arith.constant 0 : index
    %c0_12 = arith.constant 0 : index
    %24 = vector.load %arg7[%c0_11, %c0_12] : memref<16x1xf32, #tpu.memory_space<vmem>>, vector<16x1xf32>
    %cst_13 = arith.constant dense<0.000000e+00> : vector<16x128xf32>
    %25 = tpu.matmul %23, %22, %cst_13 {dimension_numbers = #tpu.dot_dimension_numbers<[1], [0], [0], [1], [0, 0, 1, 1], [], []>} : vector<16x32xf32>, vector<32x128xf32>, vector<16x128xf32> -> vector<16x128xf32>
    %26 = vector.broadcast %24 : vector<16x1xf32> to vector<16x128xf32>
    %27 = arith.addf %25, %26 : vector<16x128xf32>
    %c0_14 = arith.constant 0 : index
    %c0_15 = arith.constant 0 : index
    %28 = vector.load %arg8[%c0_14, %c0_15] : memref<32x16xf32, #tpu.memory_space<vmem>>, vector<32x16xf32>
    %c0_16 = arith.constant 0 : index
    %c0_17 = arith.constant 0 : index
    %29 = vector.load %arg9[%c0_16, %c0_17] : memref<32x1xf32, #tpu.memory_space<vmem>>, vector<32x1xf32>
    %cst_18 = arith.constant dense<0.000000e+00> : vector<32x128xf32>
    %30 = tpu.matmul %28, %27, %cst_18 {dimension_numbers = #tpu.dot_dimension_numbers<[1], [0], [0], [1], [0, 0, 1, 1], [], []>} : vector<32x16xf32>, vector<16x128xf32>, vector<32x128xf32> -> vector<32x128xf32>
    %31 = vector.broadcast %29 : vector<32x1xf32> to vector<32x128xf32>
    %32 = arith.addf %30, %31 : vector<32x128xf32>
    %33 = math.tanh %32 : vector<32x128xf32>
    %c0_19 = arith.constant 0 : index
    %c0_20 = arith.constant 0 : index
    %34 = vector.load %arg10[%c0_19, %c0_20] : memref<1x32xf32, #tpu.memory_space<vmem>>, vector<1x32xf32>
    %c0_21 = arith.constant 0 : index
    %c0_22 = arith.constant 0 : index
    %35 = vector.load %arg11[%c0_21, %c0_22] : memref<1x1xf32, #tpu.memory_space<vmem>>, vector<1x1xf32>
    %cst_23 = arith.constant dense<0.000000e+00> : vector<1x128xf32>
    %36 = tpu.matmul %34, %33, %cst_23 {dimension_numbers = #tpu.dot_dimension_numbers<[1], [0], [0], [1], [0, 0, 1, 1], [], []>} : vector<1x32xf32>, vector<32x128xf32>, vector<1x128xf32> -> vector<1x128xf32>
    %37 = vector.broadcast %35 : vector<1x1xf32> to vector<1x128xf32>
    %38 = arith.addf %36, %37 : vector<1x128xf32>
    %c0_24 = arith.constant 0 : index
    %c0_25 = arith.constant 0 : index
    %39 = vector.load %arg12[%c0_24, %c0_25] : memref<1x128xf32, #tpu.memory_space<vmem>>, vector<1x128xf32>
    tpu.vector_store %arg12[%c0_24, %c0_25], %38 {strides = array<i32>} : memref<1x128xf32, #tpu.memory_space<vmem>>, vector<1x128xf32>,
    return
  }
  func.func @transform_0(%arg0: i32) -> (i32, i32) {
    %c0_i32 = arith.constant 0 : i32
    %c0_i32_0 = arith.constant 0 : i32
    return %c0_i32, %arg0 : i32, i32
  }
  func.func @transform_1(%arg0: i32) -> (i32, i32) {
    %c0_i32 = arith.constant 0 : i32
    %c0_i32_0 = arith.constant 0 : i32
    %c0_i32_1 = arith.constant 0 : i32
    return %c0_i32, %c0_i32_0 : i32, i32
  }
  func.func @transform_2(%arg0: i32) -> (i32, i32) {
    %c0_i32 = arith.constant 0 : i32
    %c0_i32_0 = arith.constant 0 : i32
    %c0_i32_1 = arith.constant 0 : i32
    return %c0_i32, %c0_i32_0 : i32, i32
  }
  func.func @transform_3(%arg0: i32) -> (i32, i32) {
    %c0_i32 = arith.constant 0 : i32
    %c0_i32_0 = arith.constant 0 : i32
    %c0_i32_1 = arith.constant 0 : i32
    return %c0_i32, %c0_i32_0 : i32, i32
  }
  func.func @transform_4(%arg0: i32) -> (i32, i32) {
    %c0_i32 = arith.constant 0 : i32
    %c0_i32_0 = arith.constant 0 : i32
    %c0_i32_1 = arith.constant 0 : i32
    return %c0_i32, %c0_i32_0 : i32, i32
  }
  func.func @transform_5(%arg0: i32) -> (i32, i32) {
    %c0_i32 = arith.constant 0 : i32
    %c0_i32_0 = arith.constant 0 : i32
    %c0_i32_1 = arith.constant 0 : i32
    return %c0_i32, %c0_i32_0 : i32, i32
  }
  func.func @transform_6(%arg0: i32) -> (i32, i32) {
    %c0_i32 = arith.constant 0 : i32
    %c0_i32_0 = arith.constant 0 : i32
    %c0_i32_1 = arith.constant 0 : i32
    return %c0_i32, %c0_i32_0 : i32, i32
  }
  func.func @transform_7(%arg0: i32) -> (i32, i32) {
    %c0_i32 = arith.constant 0 : i32
    %c0_i32_0 = arith.constant 0 : i32
    %c0_i32_1 = arith.constant 0 : i32
    return %c0_i32, %c0_i32_0 : i32, i32
  }
  func.func @transform_8(%arg0: i32) -> (i32, i32) {
    %c0_i32 = arith.constant 0 : i32
    %c0_i32_0 = arith.constant 0 : i32
    %c0_i32_1 = arith.constant 0 : i32
    return %c0_i32, %c0_i32_0 : i32, i32
  }
  func.func @transform_9(%arg0: i32) -> (i32, i32) {
    %c0_i32 = arith.constant 0 : i32
    %c0_i32_0 = arith.constant 0 : i32
    %c0_i32_1 = arith.constant 0 : i32
    return %c0_i32, %c0_i32_0 : i32, i32
  }
  func.func @transform_10(%arg0: i32) -> (i32, i32) {
    %c0_i32 = arith.constant 0 : i32
    %c0_i32_0 = arith.constant 0 : i32
    %c0_i32_1 = arith.constant 0 : i32
    return %c0_i32, %c0_i32_0 : i32, i32
  }
  func.func @transform_11(%arg0: i32) -> (i32, i32) {
    %c0_i32 = arith.constant 0 : i32
    %c0_i32_0 = arith.constant 0 : i32
    return %c0_i32, %arg0 : i32, i32
  }
}

</mosaic_0001>

<llo_original>
// kernel: tpu_custom_call.1
$region0: #{tpu_custom_call.1}
  #allocation0 [shape = 'u32[]', space=smem, size = 0x4, offset = 0x4, fixed_abs, tag = 'smem constant byte address 0x4 - core index']
  #allocation1 [shape = 'u32[144,128]{1,0:T(1,128)}', space=vmem, size = 0x12000, scoped, tag = 'internal scratch']
  #allocation2 [shape = 'f32[1,1]{1,0:T(1,128)S(1)}', space=vmem, size = 0x200, scoped, tag = 'scoped memory for tpu_custom_call.1']
  %s0 = inlined_call_operand.vmem [shape: f32[2,384], index: 0, kind: input, shape index: {}]
  %s1 = inlined_call_operand.vmem [shape: f32[32,2], index: 1, kind: input, shape index: {}]
  %s2 = inlined_call_operand.vmem [shape: f32[32,1], index: 2, kind: input, shape index: {}]
  %s3 = inlined_call_operand.vmem [shape: f32[32,32], index: 3, kind: input, shape index: {}]
  %s4 = inlined_call_operand.vmem [shape: f32[32,1], index: 4, kind: input, shape index: {}]
  %s5 = inlined_call_operand.vmem [shape: f32[16,32], index: 5, kind: input, shape index: {}]
  %s6 = inlined_call_operand.vmem [shape: f32[16,1], index: 6, kind: input, shape index: {}]
  %s7 = inlined_call_operand.vmem [shape: f32[32,16], index: 7, kind: input, shape index: {}]
  %s8 = inlined_call_operand.vmem [shape: f32[32,1], index: 8, kind: input, shape index: {}]
  %s9 = inlined_call_operand.vmem [shape: f32[1,32], index: 9, kind: input, shape index: {}]
  %s10 = inlined_call_operand.<no memory space> [shape: f32[1,1], index: 10, kind: input, shape index: {}]
  %s11 = inlined_call_operand.hbm [shape: f32[1,384], index: 11, kind: output, shape index: {}]
  %s12 = sld [smem:[#allocation0]]
  $region77: #{tpu_custom_call.1} parent=0
    _
  %s14 = ssub.s32 1, %s12
  %s15 = scalar_select 0, %s14, %s12
  %v16 = vstv %s10
  %17 = vst [vmem:[#allocation2] sm:$0x1] %v16
  $region1: #{tpu_custom_call.1} parent=0
    #allocation3 [shape = 'u8[1024]{0}', space=vmem, size = 0x400, scoped, tag = 'output window, operand 0']
    #allocation4 [shape = 's32[2]{0}', space=sflag, size = 0x8, scoped, tag = 'scoped memory for tpu_custom_call.1']
    %18 = vsyncpa [#allocation4], 0
    %s19 = scalar_lea.sflag [#allocation4], 1
    %20 = vsyncpa %s19, 0
    loop: start=0, step=1, limit=5
    $region2: #{tpu_custom_call.1} parent=1 // loop_pre_header
      _
    $region3: #{tpu_custom_call.1} parent=1 // loop_header
      %s22 = sphi 0, %s26
      %p23 = scmp.ge.s32.totalorder %s22, 5
      %s32 = sphi 0, %s34
      %s35 = sphi 0, %s32
      %s36 = sphi 0, %s35
      %s52 = sphi 0, %s36
      %s56 = sphi 0, %s56
      %s58 = sphi 0, %s56
      %s59 = sphi 0, %s58
      %s73 = sphi 0, %s59
      %s77 = sphi 0, %s77
      %s79 = sphi 0, %s77
      %s80 = sphi 0, %s79
      %s94 = sphi 0, %s80
      %s98 = sphi 0, %s98
      %s100 = sphi 0, %s98
      %s101 = sphi 0, %s100
      %s115 = sphi 0, %s101
      %s119 = sphi 0, %s119
      %s121 = sphi 0, %s119
      %s122 = sphi 0, %s121
      %s136 = sphi 0, %s122
      %s140 = sphi 0, %s140
      %s142 = sphi 0, %s140
      %s143 = sphi 0, %s142
      %s157 = sphi 0, %s143
      %s161 = sphi 0, %s161
      %s163 = sphi 0, %s161
      %s164 = sphi 0, %s163
      %s178 = sphi 0, %s164
      %s182 = sphi 0, %s182
      %s184 = sphi 0, %s182
      %s185 = sphi 0, %s184
      %s199 = sphi 0, %s185
      %s203 = sphi 0, %s203
      %s205 = sphi 0, %s203
      %s206 = sphi 0, %s205
      %s220 = sphi 0, %s206
      %s224 = sphi 0, %s224
      %s226 = sphi 0, %s224
      %s227 = sphi 0, %s226
      %s241 = sphi 0, %s227
      %s245 = sphi 0, %s245
      %s247 = sphi 0, %s245
      %s248 = sphi 0, %s247
      %s262 = sphi 0, %s248
      %s268 = sphi 0, %s270
      %s271 = sphi 0, %s268
      %s272 = sphi 0, %s271
      %s288 = sphi 0, %s272
    $region4: #{tpu_custom_call.1} parent=1 // loop_header_branch
      %25 = sbr.rel (%p23) target = $region8
    $region5: #{tpu_custom_call.1} parent=1 // loop_body
      %s27 = ssub.s32 %s22, 1
      %s28 = ssub.s32 %s22, 2
      %s29 = sadd.s32 %s22, 1
      %s30 = ssub.s32 %s22, %s29
      %p31 = scmp.eq.s32.totalorder %s30, 0
      %s33 = sadd.s32 %s32, 1
      %s34 = scalar_select %p31, %s32, %s33
      %p37 = pneg %p31
      %p38 = scmp.eq.s32.totalorder %s22, 2
      %p39 = por %p37, %p38
      %p40 = scmp.ne.s32.totalorder %s32, %s35
      %p41 = scmp.eq.s32.totalorder %s22, 0
      %p42 = por %p40, %p41
      %p43 = scmp.ne.s32.totalorder %s32, %s35
      %p44 = scmp.eq.s32.totalorder %s27, 2
      %p45 = por %p43, %p44
      %p46 = scmp.ne.s32.totalorder %s35, %s36
      %p47 = scmp.eq.s32.totalorder %s27, 0
      %p48 = por %p46, %p47
      %p49 = scmp.ne.s32.totalorder %s35, %s36
      %p50 = scmp.eq.s32.totalorder %s28, 2
      %p51 = por %p49, %p50
      %p53 = scmp.ne.s32.totalorder %s36, %s52
      %p54 = scmp.eq.s32.totalorder %s28, 0
      %p55 = por %p53, %p54
      %s57 = sadd.s32 %s56, 1
      %p60 = scmp.eq.s32.totalorder %s22, 2
      %p61 = scmp.ne.s32.totalorder %s56, %s58
      %p62 = scmp.eq.s32.totalorder %s22, 0
      %p63 = por %p61, %p62
      %p64 = scmp.ne.s32.totalorder %s56, %s58
      %p65 = scmp.eq.s32.totalorder %s27, 2
      %p66 = por %p64, %p65
      %p67 = scmp.ne.s32.totalorder %s58, %s59
      %p68 = scmp.eq.s32.totalorder %s27, 0
      %p69 = por %p67, %p68
      %p70 = scmp.ne.s32.totalorder %s58, %s59
      %p71 = scmp.eq.s32.totalorder %s28, 2
      %p72 = por %p70, %p71
      %p74 = scmp.ne.s32.totalorder %s59, %s73
      %p75 = scmp.eq.s32.totalorder %s28, 0
      %p76 = por %p74, %p75
      %s78 = sadd.s32 %s77, 1
      %p81 = scmp.eq.s32.totalorder %s22, 2
      %p82 = scmp.ne.s32.totalorder %s77, %s79
      %p83 = scmp.eq.s32.totalorder %s22, 0
      %p84 = por %p82, %p83
      %p85 = scmp.ne.s32.totalorder %s77, %s79
      %p86 = scmp.eq.s32.totalorder %s27, 2
      %p87 = por %p85, %p86
      %p88 = scmp.ne.s32.totalorder %s79, %s80
      %p89 = scmp.eq.s32.totalorder %s27, 0
      %p90 = por %p88, %p89
      %p91 = scmp.ne.s32.totalorder %s79, %s80
      %p92 = scmp.eq.s32.totalorder %s28, 2
      %p93 = por %p91, %p92
      %p95 = scmp.ne.s32.totalorder %s80, %s94
      %p96 = scmp.eq.s32.totalorder %s28, 0
      %p97 = por %p95, %p96
      %s99 = sadd.s32 %s98, 1
      %p102 = scmp.eq.s32.totalorder %s22, 2
      %p103 = scmp.ne.s32.totalorder %s98, %s100
      %p104 = scmp.eq.s32.totalorder %s22, 0
      %p105 = por %p103, %p104
      %p106 = scmp.ne.s32.totalorder %s98, %s100
      %p107 = scmp.eq.s32.totalorder %s27, 2
      %p108 = por %p106, %p107
      %p109 = scmp.ne.s32.totalorder %s100, %s101
      %p110 = scmp.eq.s32.totalorder %s27, 0
      %p111 = por %p109, %p110
      %p112 = scmp.ne.s32.totalorder %s100, %s101
      %p113 = scmp.eq.s32.totalorder %s28, 2
      %p114 = por %p112, %p113
      %p116 = scmp.ne.s32.totalorder %s101, %s115
      %p117 = scmp.eq.s32.totalorder %s28, 0
      %p118 = por %p116, %p117
      %s120 = sadd.s32 %s119, 1
      %p123 = scmp.eq.s32.totalorder %s22, 2
      %p124 = scmp.ne.s32.totalorder %s119, %s121
      %p125 = scmp.eq.s32.totalorder %s22, 0
      %p126 = por %p124, %p125
      %p127 = scmp.ne.s32.totalorder %s119, %s121
      %p128 = scmp.eq.s32.totalorder %s27, 2
      %p129 = por %p127, %p128
      %p130 = scmp.ne.s32.totalorder %s121, %s122
      %p131 = scmp.eq.s32.totalorder %s27, 0
      %p132 = por %p130, %p131
      %p133 = scmp.ne.s32.totalorder %s121, %s122
      %p134 = scmp.eq.s32.totalorder %s28, 2
      %p135 = por %p133, %p134
      %p137 = scmp.ne.s32.totalorder %s122, %s136
      %p138 = scmp.eq.s32.totalorder %s28, 0
      %p139 = por %p137, %p138
      %s141 = sadd.s32 %s140, 1
      %p144 = scmp.eq.s32.totalorder %s22, 2
      %p145 = scmp.ne.s32.totalorder %s140, %s142
      %p146 = scmp.eq.s32.totalorder %s22, 0
      %p147 = por %p145, %p146
      %p148 = scmp.ne.s32.totalorder %s140, %s142
      %p149 = scmp.eq.s32.totalorder %s27, 2
      %p150 = por %p148, %p149
      %p151 = scmp.ne.s32.totalorder %s142, %s143
      %p152 = scmp.eq.s32.totalorder %s27, 0
      %p153 = por %p151, %p152
      %p154 = scmp.ne.s32.totalorder %s142, %s143
      %p155 = scmp.eq.s32.totalorder %s28, 2
      %p156 = por %p154, %p155
      %p158 = scmp.ne.s32.totalorder %s143, %s157
      %p159 = scmp.eq.s32.totalorder %s28, 0
      %p160 = por %p158, %p159
      %s162 = sadd.s32 %s161, 1
      %p165 = scmp.eq.s32.totalorder %s22, 2
      %p166 = scmp.ne.s32.totalorder %s161, %s163
      %p167 = scmp.eq.s32.totalorder %s22, 0
      %p168 = por %p166, %p167
      %p169 = scmp.ne.s32.totalorder %s161, %s163
      %p170 = scmp.eq.s32.totalorder %s27, 2
      %p171 = por %p169, %p170
      %p172 = scmp.ne.s32.totalorder %s163, %s164
      %p173 = scmp.eq.s32.totalorder %s27, 0
      %p174 = por %p172, %p173
      %p175 = scmp.ne.s32.totalorder %s163, %s164
      %p176 = scmp.eq.s32.totalorder %s28, 2
      %p177 = por %p175, %p176
      %p179 = scmp.ne.s32.totalorder %s164, %s178
      %p180 = scmp.eq.s32.totalorder %s28, 0
      %p181 = por %p179, %p180
      %s183 = sadd.s32 %s182, 1
      %p186 = scmp.eq.s32.totalorder %s22, 2
      %p187 = scmp.ne.s32.totalorder %s182, %s184
      %p188 = scmp.eq.s32.totalorder %s22, 0
      %p189 = por %p187, %p188
      %p190 = scmp.ne.s32.totalorder %s182, %s184
      %p191 = scmp.eq.s32.totalorder %s27, 2
      %p192 = por %p190, %p191
      %p193 = scmp.ne.s32.totalorder %s184, %s185
      %p194 = scmp.eq.s32.totalorder %s27, 0
      %p195 = por %p193, %p194
      %p196 = scmp.ne.s32.totalorder %s184, %s185
      %p197 = scmp.eq.s32.totalorder %s28, 2
      %p198 = por %p196, %p197
      %p200 = scmp.ne.s32.totalorder %s185, %s199
      %p201 = scmp.eq.s32.totalorder %s28, 0
      %p202 = por %p200, %p201
      %s204 = sadd.s32 %s203, 1
      %p207 = scmp.eq.s32.totalorder %s22, 2
      %p208 = scmp.ne.s32.totalorder %s203, %s205
      %p209 = scmp.eq.s32.totalorder %s22, 0
      %p210 = por %p208, %p209
      %p211 = scmp.ne.s32.totalorder %s203, %s205
      %p212 = scmp.eq.s32.totalorder %s27, 2
      %p213 = por %p211, %p212
      %p214 = scmp.ne.s32.totalorder %s205, %s206
      %p215 = scmp.eq.s32.totalorder %s27, 0
      %p216 = por %p214, %p215
      %p217 = scmp.ne.s32.totalorder %s205, %s206
      %p218 = scmp.eq.s32.totalorder %s28, 2
      %p219 = por %p217, %p218
      %p221 = scmp.ne.s32.totalorder %s206, %s220
      %p222 = scmp.eq.s32.totalorder %s28, 0
      %p223 = por %p221, %p222
      %s225 = sadd.s32 %s224, 1
      %p228 = scmp.eq.s32.totalorder %s22, 2
      %p229 = scmp.ne.s32.totalorder %s224, %s226
      %p230 = scmp.eq.s32.totalorder %s22, 0
      %p231 = por %p229, %p230
      %p232 = scmp.ne.s32.totalorder %s224, %s226
      %p233 = scmp.eq.s32.totalorder %s27, 2
      %p234 = por %p232, %p233
      %p235 = scmp.ne.s32.totalorder %s226, %s227
      %p236 = scmp.eq.s32.totalorder %s27, 0
      %p237 = por %p235, %p236
      %p238 = scmp.ne.s32.totalorder %s226, %s227
      %p239 = scmp.eq.s32.totalorder %s28, 2
      %p240 = por %p238, %p239
      %p242 = scmp.ne.s32.totalorder %s227, %s241
      %p243 = scmp.eq.s32.totalorder %s28, 0
      %p244 = por %p242, %p243
      %s246 = sadd.s32 %s245, 1
      %p249 = scmp.eq.s32.totalorder %s22, 2
      %p250 = scmp.ne.s32.totalorder %s245, %s247
      %p251 = scmp.eq.s32.totalorder %s22, 0
      %p252 = por %p250, %p251
      %p253 = scmp.ne.s32.totalorder %s245, %s247
      %p254 = scmp.eq.s32.totalorder %s27, 2
      %p255 = por %p253, %p254
      %p256 = scmp.ne.s32.totalorder %s247, %s248
      %p257 = scmp.eq.s32.totalorder %s27, 0
      %p258 = por %p256, %p257
      %p259 = scmp.ne.s32.totalorder %s247, %s248
      %p260 = scmp.eq.s32.totalorder %s28, 2
      %p261 = por %p259, %p260
      %p263 = scmp.ne.s32.totalorder %s248, %s262
      %p264 = scmp.eq.s32.totalorder %s28, 0
      %p265 = por %p263, %p264
      %s266 = ssub.s32 %s22, %s29
      %p267 = scmp.eq.s32.totalorder %s266, 0
      %s269 = sadd.s32 %s268, 1
      %s270 = scalar_select %p267, %s268, %s269
      %p273 = pneg %p267
      %p274 = scmp.eq.s32.totalorder %s22, 2
      %p275 = por %p273, %p274
      %p276 = scmp.ne.s32.totalorder %s268, %s271
      %p277 = scmp.eq.s32.totalorder %s22, 0
      %p278 = por %p276, %p277
      %p279 = scmp.ne.s32.totalorder %s268, %s271
      %p280 = scmp.eq.s32.totalorder %s27, 2
      %p281 = por %p279, %p280
      %p282 = scmp.ne.s32.totalorder %s271, %s272
      %p283 = scmp.eq.s32.totalorder %s27, 0
      %p284 = por %p282, %p283
      %p285 = scmp.ne.s32.totalorder %s271, %s272
      %p286 = scmp.eq.s32.totalorder %s28, 2
      %p287 = por %p285, %p286
      %p289 = scmp.ne.s32.totalorder %s272, %s288
      %p290 = scmp.eq.s32.totalorder %s28, 0
      %p291 = por %p289, %p290
      %p292 = scmp.le.s32.totalorder 1, %s22
      %p293 = scmp.lt.s32.totalorder %s22, 4
      %p294 = pnand %p292, %p293
      %p295 = pneg %p294
      // Predicated region
      $region9: #{tpu_custom_call.1} parent=5 // pred_check
        _
      $region10: #{tpu_custom_call.1} parent=5 // pred_check_branch
        %297 = sbr.rel (%p294) target = $region12
      $region11: #{tpu_custom_call.1} parent=5 // pred_region
        %s298 = ssub.s32 %s22, 1
        // Predicated region
        $region13: #{tpu_custom_call.1} parent=11 // pred_check
          %p299 = pneg %p69
        $region14: #{tpu_custom_call.1} parent=11 // pred_check_branch
          %301 = sbr.rel (%p299) target = $region16
        $region15: #{tpu_custom_call.1} parent=11 // pred_region
          _
        $region16: #{tpu_custom_call.1} parent=11 // pred_fallthru
          _
        // Predicated region
        $region17: #{tpu_custom_call.1} parent=11 // pred_check
          %p302 = pneg %p90
        $region18: #{tpu_custom_call.1} parent=11 // pred_check_branch
          %304 = sbr.rel (%p302) target = $region20
        $region19: #{tpu_custom_call.1} parent=11 // pred_region
          _
        $region20: #{tpu_custom_call.1} parent=11 // pred_fallthru
          _
        // Predicated region
        $region21: #{tpu_custom_call.1} parent=11 // pred_check
          %p305 = pneg %p111
        $region22: #{tpu_custom_call.1} parent=11 // pred_check_branch
          %307 = sbr.rel (%p305) target = $region24
        $region23: #{tpu_custom_call.1} parent=11 // pred_region
          _
        $region24: #{tpu_custom_call.1} parent=11 // pred_fallthru
          _
        // Predicated region
        $region25: #{tpu_custom_call.1} parent=11 // pred_check
          %p308 = pneg %p132
        $region26: #{tpu_custom_call.1} parent=11 // pred_check_branch
          %310 = sbr.rel (%p308) target = $region28
        $region27: #{tpu_custom_call.1} parent=11 // pred_region
          _
        $region28: #{tpu_custom_call.1} parent=11 // pred_fallthru
          _
        // Predicated region
        $region29: #{tpu_custom_call.1} parent=11 // pred_check
          %p311 = pneg %p153
        $region30: #{tpu_custom_call.1} parent=11 // pred_check_branch
          %313 = sbr.rel (%p311) target = $region32
        $region31: #{tpu_custom_call.1} parent=11 // pred_region
          _
        $region32: #{tpu_custom_call.1} parent=11 // pred_fallthru
          _
        // Predicated region
        $region33: #{tpu_custom_call.1} parent=11 // pred_check
          %p314 = pneg %p174
        $region34: #{tpu_custom_call.1} parent=11 // pred_check_branch
          %316 = sbr.rel (%p314) target = $region36
        $region35: #{tpu_custom_call.1} parent=11 // pred_region
          _
        $region36: #{tpu_custom_call.1} parent=11 // pred_fallthru
          _
        // Predicated region
        $region37: #{tpu_custom_call.1} parent=11 // pred_check
          %p317 = pneg %p195
        $region38: #{tpu_custom_call.1} parent=11 // pred_check_branch
          %319 = sbr.rel (%p317) target = $region40
        $region39: #{tpu_custom_call.1} parent=11 // pred_region
          _
        $region40: #{tpu_custom_call.1} parent=11 // pred_fallthru
          _
        // Predicated region
        $region41: #{tpu_custom_call.1} parent=11 // pred_check
          %p320 = pneg %p216
        $region42: #{tpu_custom_call.1} parent=11 // pred_check_branch
          %322 = sbr.rel (%p320) target = $region44
        $region43: #{tpu_custom_call.1} parent=11 // pred_region
          _
        $region44: #{tpu_custom_call.1} parent=11 // pred_fallthru
          _
        // Predicated region
        $region45: #{tpu_custom_call.1} parent=11 // pred_check
          %p323 = pneg %p237
        $region46: #{tpu_custom_call.1} parent=11 // pred_check_branch
          %325 = sbr.rel (%p323) target = $region48
        $region47: #{tpu_custom_call.1} parent=11 // pred_region
          _
        $region48: #{tpu_custom_call.1} parent=11 // pred_fallthru
          _
        // Predicated region
        $region49: #{tpu_custom_call.1} parent=11 // pred_check
          %p326 = pneg %p258
        $region50: #{tpu_custom_call.1} parent=11 // pred_check_branch
          %328 = sbr.rel (%p326) target = $region52
        $region51: #{tpu_custom_call.1} parent=11 // pred_region
          _
        $region52: #{tpu_custom_call.1} parent=11 // pred_fallthru
          _
      $region12: #{tpu_custom_call.1} parent=5 // pred_fallthru
        _
      %p329 = scmp.lt.s32.totalorder %s22, 3
      // Predicated region
      $region53: #{tpu_custom_call.1} parent=5 // pred_check
        %p330 = pneg %p329
      $region54: #{tpu_custom_call.1} parent=5 // pred_check_branch
        %332 = sbr.rel (%p330) target = $region56
      $region55: #{tpu_custom_call.1} parent=5 // pred_region
        // Predicated region
        $region57: #{tpu_custom_call.1} parent=55 // pred_check
          %p333 = pneg %p42
        $region58: #{tpu_custom_call.1} parent=55 // pred_check_branch
          %335 = sbr.rel (%p333) target = $region60
        $region59: #{tpu_custom_call.1} parent=55 // pred_region
          %p336 = scmp.lt.s32.totalorder %s22, 2
          %s337 = scalar_select %p336, %s22, 2
          %s338 = smul.addr %s337, 2
          %s339 = scalar_lea.vmem %s0, %s338
        $region60: #{tpu_custom_call.1} parent=55 // pred_fallthru
          _
      $region56: #{tpu_custom_call.1} parent=5 // pred_fallthru
        _
      %p340 = scmp.le.s32.totalorder 1, %s22
      %p341 = scmp.lt.s32.totalorder %s22, 4
      %p342 = pnand %p340, %p341
      %p343 = pneg %p342
      // Predicated region
      $region61: #{tpu_custom_call.1} parent=5 // pred_check
        _
      $region62: #{tpu_custom_call.1} parent=5 // pred_check_branch
        %345 = sbr.rel (%p342) target = $region64
      $region63: #{tpu_custom_call.1} parent=5 // pred_region
        %s346 = ssub.s32 %s22, 1
        %p347 = scmp.lt.s32.totalorder %s27, 2
        %s348 = scalar_select %p347, %s27, 2
        %s349 = smul.addr %s348, 2
        %s350 = scalar_lea.vmem %s0, %s349
        %p351 = pneg %p48
        %p352 = pneg %p45
        %p353 = pneg %p69
        %p354 = pneg %p66
        %p355 = pneg %p90
        %p356 = pneg %p87
        %p357 = pneg %p111
        %p358 = pneg %p108
        %p359 = pneg %p132
        %p360 = pneg %p129
        %p361 = pneg %p153
        %p362 = pneg %p150
        %p363 = pneg %p174
        %p364 = pneg %p171
        %p365 = pneg %p195
        %p366 = pneg %p192
        %p367 = pneg %p216
        %p368 = pneg %p213
        %p369 = pneg %p237
        %p370 = pneg %p234
        %p371 = pneg %p258
        %p372 = pneg %p255
        %p373 = pneg %p284
        %p374 = pneg %p281
        %s375 = sand.u32 %s271, 1
        %s376 = scalar_lea.sflag [#allocation4], %s375
        %s377 = sand.u32 %s271, 1
        %s378 = scalar_lea.vmem [#allocation3], %s377
        %p379 = scmp.lt.s32.totalorder %s27, 2
        %s380 = scalar_select %p379, %s27, 2
        %s381 = smul.addr %s380, 2
        %s382 = scalar_lea.vmem %s0, %s381
        %v383 = vld [vmem:[%s382] sm:$0x3]
        %v384 = vld [vmem:[%s1] sm:$0xff]
        %v385 = vld [vmem:[%s1 + $0x8] sm:$0xff]
        %v386 = vld [vmem:[%s1 + $0x10] sm:$0xff]
        %v387 = vld [vmem:[%s1 + $0x18] sm:$0xff]
        %v388 = vld [vmem:[%s2] sm:$0xff]
        %v389 = vld [vmem:[%s2 + $0x8] sm:$0xff]
        %v390 = vld [vmem:[%s2 + $0x10] sm:$0xff]
        %v391 = vld [vmem:[%s2 + $0x18] sm:$0xff]
        %393 = vset.pattern.permute.xlu0 0
        %394 = vperm.xlu0 %393, %v384
        %v395 = vpop.permute.xlu0 %394
        %398 = vset.pattern.permute.xlu0 0
        %399 = vperm.xlu0 %398, %v385
        %v400 = vpop.permute.xlu0 %399
        %403 = vset.pattern.permute.xlu0 0
        %404 = vperm.xlu0 %403, %v386
        %v405 = vpop.permute.xlu0 %404
        %408 = vset.pattern.permute.xlu0 0
        %409 = vperm.xlu0 %408, %v387
        %v410 = vpop.permute.xlu0 %409
        %v412 = vlaneseq
        %v413 = vshrl.u32 %v412, 7
        %v414 = vsub.s32 0, %v413
        %v415 = vrot.slane %v383, %v414
        %v416 = vmul.f32 %v395, %v415
        %v417 = vmul.f32 %v400, %v415
        %v418 = vmul.f32 %v405, %v415
        %v419 = vmul.f32 %v410, %v415
        %420 = vset.pattern.permute.xlu0 1
        %421 = vperm.xlu0 %420, %v384
        %v422 = vpop.permute.xlu0 %421
        %424 = vset.pattern.permute.xlu0 1
        %425 = vperm.xlu0 %424, %v385
        %v426 = vpop.permute.xlu0 %425
        %428 = vset.pattern.permute.xlu0 1
        %429 = vperm.xlu0 %428, %v386
        %v430 = vpop.permute.xlu0 %429
        %432 = vset.pattern.permute.xlu0 1
        %433 = vperm.xlu0 %432, %v387
        %v434 = vpop.permute.xlu0 %433
        %v436 = vlaneseq
        %v437 = vshrl.u32 %v436, 7
        %v438 = vsub.s32 1, %v437
        %v439 = vrot.slane %v383, %v438
        %v440 = vmul.f32 %v422, %v439
        %v441 = vmul.f32 %v426, %v439
        %v442 = vmul.f32 %v430, %v439
        %v443 = vmul.f32 %v434, %v439
        %v444 = vadd.f32 %v416, %v440
        %v445 = vadd.f32 %v417, %v441
        %v446 = vadd.f32 %v418, %v442
        %v447 = vadd.f32 %v419, %v443
        %449 = vset.pattern.permute.xlu0 0
        %450 = vperm.xlu0 %449, %v388
        %v451 = vpop.permute.xlu0 %450
        %454 = vset.pattern.permute.xlu0 0
        %455 = vperm.xlu0 %454, %v389
        %v456 = vpop.permute.xlu0 %455
        %459 = vset.pattern.permute.xlu0 0
        %460 = vperm.xlu0 %459, %v390
        %v461 = vpop.permute.xlu0 %460
        %464 = vset.pattern.permute.xlu0 0
        %465 = vperm.xlu0 %464, %v391
        %v466 = vpop.permute.xlu0 %465
        %v468 = vadd.f32 %v444, %v451
        %v469 = vadd.f32 %v445, %v456
        %v470 = vadd.f32 %v446, %v461
        %v471 = vadd.f32 %v447, %v466
        %v472 = vtanh.pop %v468
        %v473 = vtanh.pop %v469
        %v474 = vtanh.pop %v470
        %v475 = vtanh.pop %v471
        %v476 = vld [vmem:[%s3] sm:$0xff]
        %v477 = vld [vmem:[%s3 + $0x8] sm:$0xff]
        %v478 = vld [vmem:[%s3 + $0x10] sm:$0xff]
        %v479 = vld [vmem:[%s3 + $0x18] sm:$0xff]
        %v480 = vld [vmem:[%s4] sm:$0xff]
        %v481 = vld [vmem:[%s4 + $0x8] sm:$0xff]
        %v482 = vld [vmem:[%s4 + $0x10] sm:$0xff]
        %v483 = vld [vmem:[%s4 + $0x18] sm:$0xff]
        %485 = vset.pattern.permute.xlu0 0
        %486 = vperm.xlu0 %485, %v480
        %v487 = vpop.permute.xlu0 %486
        %490 = vset.pattern.permute.xlu0 0
        %491 = vperm.xlu0 %490, %v481
        %v492 = vpop.permute.xlu0 %491
        %495 = vset.pattern.permute.xlu0 0
        %496 = vperm.xlu0 %495, %v482
        %v497 = vpop.permute.xlu0 %496
        %500 = vset.pattern.permute.xlu0 0
        %501 = vperm.xlu0 %500, %v483
        %v502 = vpop.permute.xlu0 %501
        %vm504 = vcmask 261120
        %v506 = vsel %vm504, %v476, 0
        %v509 = vsel %vm504, %v477, 0
        %v512 = vsel %vm504, %v478, 0
        %v515 = vsel %vm504, %v479, 0
        %517 = vmatprep.subr.mxu0 0.0
        %518 = vmatpush1.msra.mxu0 %v472
        %519 = vmatprep.subr.mxu0 0.0
        %520 = vmatpush1.msra.mxu0 %v473
        %521 = vmatprep.subr.mxu0 0.0
        %522 = vmatpush1.msra.mxu0 %v474
        %523 = vmatprep.subr.mxu0 0.0
        %524 = vmatpush1.msra.mxu0 %v475
        %525 = vmatprep.subr.mxu0 0.0
        %526 = vmatpush1.msra.mxu0 0.0
        %527 = vmatprep.subr.mxu0 0.0
        %528 = vmatpush1.msra.mxu0 0.0
        %529 = vmatprep.subr.mxu0 0.0
        %530 = vmatpush1.msra.mxu0 0.0
        %531 = vmatprep.subr.mxu0 0.0
        %532 = vmatpush1.msra.mxu0 0.0
        %533 = vmatprep.subr.mxu0 0.0
        %534 = vmatpush1.msra.mxu0 0.0
        %535 = vmatprep.subr.mxu0 0.0
        %536 = vmatpush1.msra.mxu0 0.0
        %537 = vmatprep.subr.mxu0 0.0
        %538 = vmatpush1.msra.mxu0 0.0
        %539 = vmatprep.subr.mxu0 0.0
        %540 = vmatpush1.msra.mxu0 0.0
        %541 = vmatprep.subr.mxu0 0.0
        %542 = vmatpush1.msra.mxu0 0.0
        %543 = vmatprep.subr.mxu0 0.0
        %544 = vmatpush1.msra.mxu0 0.0
        %545 = vmatprep.subr.mxu0 0.0
        %546 = vmatpush1.msra.mxu0 0.0
        %547 = vmatprep.subr.mxu0 0.0
        %548 = vmatpush1.msra.mxu0 0.0
        %549 = vmatprep.subr.mxu0 0.0
        %550 = vmatpush1.msra.mxu0 0.0
        %551 = vmatprep.subr.mxu0 0.0
        %552 = vmatpush1.msra.mxu0 0.0
        %553 = vmatprep.subr.mxu0 0.0
        %554 = vmatpush1.msra.mxu0 0.0
        %555 = vmatprep.subr.mxu0 0.0
        %556 = vmatpush1.msra.mxu0 0.0
        %557 = vmatprep.subr.mxu0 0.0
        %558 = vmatpush1.msra.mxu0 0.0
        %559 = vmatprep.subr.mxu0 0.0
        %560 = vmatpush1.msra.mxu0 0.0
        %561 = vmatprep.subr.mxu0 0.0
        %562 = vmatpush1.msra.mxu0 0.0
        %563 = vmatprep.subr.mxu0 0.0
        %564 = vmatpush1.msra.mxu0 0.0
        %565 = vmatprep.subr.mxu0 0.0
        %566 = vmatpush1.msra.mxu0 0.0
        %567 = vmatprep.subr.mxu0 0.0
        %568 = vmatpush1.msra.mxu0 0.0
        %569 = vmatprep.subr.mxu0 0.0
        %570 = vmatpush1.msra.mxu0 0.0
        %571 = vmatprep.subr.mxu0 0.0
        %572 = vmatpush1.msra.mxu0 0.0
        %573 = vmatprep.subr.mxu0 0.0
        %574 = vmatpush1.msra.mxu0 0.0
        %575 = vmatprep.subr.mxu0 0.0
        %576 = vmatpush1.msra.mxu0 0.0
        %577 = vmatprep.subr.mxu0 0.0
        %578 = vmatpush1.msra.mxu0 0.0
        %579 = vmatprep.subr.mxu0 0.0
        %580 = vmatpush1.msra.mxu0 0.0
        %581 = vmatprep.mubr.f32.mxu0 0.0
        %582 = vmatmul.mubr.f32.gmra.mrb[0].mxu0 %v506
        %v583 = vpop.f32.mrb[0].mxu0
        %v584 = vadd.f32 %v487, %v583
        %v585 = vpop.f32.mrb[0].mxu0
        %586 = vmatprep.mubr.f32.mxu0 0.0
        %587 = vmatmul.mubr.f32.gmra.mrb[0].mxu0 %v509
        %v588 = vpop.f32.mrb[0].mxu0
        %v589 = vadd.f32 %v492, %v588
        %v590 = vpop.f32.mrb[0].mxu0
        %591 = vmatprep.mubr.f32.mxu0 0.0
        %592 = vmatmul.mubr.f32.gmra.mrb[0].mxu0 %v512
        %v593 = vpop.f32.mrb[0].mxu0
        %v594 = vadd.f32 %v497, %v593
        %v595 = vpop.f32.mrb[0].mxu0
        %596 = vmatprep.mubr.f32.mxu0 0.0
        %597 = vmatmul.mubr.f32.gmra.mrb[0].mxu0 %v515
        %v598 = vpop.f32.mrb[0].mxu0
        %v599 = vadd.f32 %v502, %v598
        %v600 = vpop.f32.mrb[0].mxu0
        %601 = vdwg.mxu0
        %v602 = vtanh.pop %v584
        %v603 = vtanh.pop %v589
        %v604 = vtanh.pop %v594
        %v605 = vtanh.pop %v599
        %v606 = vld [vmem:[%s5] sm:$0xff]
        %v607 = vld [vmem:[%s5 + $0x8] sm:$0xff]
        %v608 = vld [vmem:[%s6] sm:$0xff]
        %v609 = vld [vmem:[%s6 + $0x8] sm:$0xff]
        %611 = vset.pattern.permute.xlu0 0
        %612 = vperm.xlu0 %611, %v608
        %v613 = vpop.permute.xlu0 %612
        %616 = vset.pattern.permute.xlu0 0
        %617 = vperm.xlu0 %616, %v609
        %v618 = vpop.permute.xlu0 %617
        %v621 = vsel %vm504, %v606, 0
        %v624 = vsel %vm504, %v607, 0
        %626 = vmatprep.subr.mxu0 0.0
        %627 = vmatpush1.msra.mxu0 %v602
        %628 = vmatprep.subr.mxu0 0.0
        %629 = vmatpush1.msra.mxu0 %v603
        %630 = vmatprep.subr.mxu0 0.0
        %631 = vmatpush1.msra.mxu0 %v604
        %632 = vmatprep.subr.mxu0 0.0
        %633 = vmatpush1.msra.mxu0 %v605
        %634 = vmatprep.subr.mxu0 0.0
        %635 = vmatpush1.msra.mxu0 0.0
        %636 = vmatprep.subr.mxu0 0.0
        %637 = vmatpush1.msra.mxu0 0.0
        %638 = vmatprep.subr.mxu0 0.0
        %639 = vmatpush1.msra.mxu0 0.0
        %640 = vmatprep.subr.mxu0 0.0
        %641 = vmatpush1.msra.mxu0 0.0
        %642 = vmatprep.subr.mxu0 0.0
        %643 = vmatpush1.msra.mxu0 0.0
        %644 = vmatprep.subr.mxu0 0.0
        %645 = vmatpush1.msra.mxu0 0.0
        %646 = vmatprep.subr.mxu0 0.0
        %647 = vmatpush1.msra.mxu0 0.0
        %648 = vmatprep.subr.mxu0 0.0
        %649 = vmatpush1.msra.mxu0 0.0
        %650 = vmatprep.subr.mxu0 0.0
        %651 = vmatpush1.msra.mxu0 0.0
        %652 = vmatprep.subr.mxu0 0.0
        %653 = vmatpush1.msra.mxu0 0.0
        %654 = vmatprep.subr.mxu0 0.0
        %655 = vmatpush1.msra.mxu0 0.0
        %656 = vmatprep.subr.mxu0 0.0
        %657 = vmatpush1.msra.mxu0 0.0
        %658 = vmatprep.subr.mxu0 0.0
        %659 = vmatpush1.msra.mxu0 0.0
        %660 = vmatprep.subr.mxu0 0.0
        %661 = vmatpush1.msra.mxu0 0.0
        %662 = vmatprep.subr.mxu0 0.0
        %663 = vmatpush1.msra.mxu0 0.0
        %664 = vmatprep.subr.mxu0 0.0
        %665 = vmatpush1.msra.mxu0 0.0
        %666 = vmatprep.subr.mxu0 0.0
        %667 = vmatpush1.msra.mxu0 0.0
        %668 = vmatprep.subr.mxu0 0.0
        %669 = vmatpush1.msra.mxu0 0.0
        %670 = vmatprep.subr.mxu0 0.0
        %671 = vmatpush1.msra.mxu0 0.0
        %672 = vmatprep.subr.mxu0 0.0
        %673 = vmatpush1.msra.mxu0 0.0
        %674 = vmatprep.subr.mxu0 0.0
        %675 = vmatpush1.msra.mxu0 0.0
        %676 = vmatprep.subr.mxu0 0.0
        %677 = vmatpush1.msra.mxu0 0.0
        %678 = vmatprep.subr.mxu0 0.0
        %679 = vmatpush1.msra.mxu0 0.0
        %680 = vmatprep.subr.mxu0 0.0
        %681 = vmatpush1.msra.mxu0 0.0
        %682 = vmatprep.subr.mxu0 0.0
        %683 = vmatpush1.msra.mxu0 0.0
        %684 = vmatprep.subr.mxu0 0.0
        %685 = vmatpush1.msra.mxu0 0.0
        %686 = vmatprep.subr.mxu0 0.0
        %687 = vmatpush1.msra.mxu0 0.0
        %688 = vmatprep.subr.mxu0 0.0
        %689 = vmatpush1.msra.mxu0 0.0
        %690 = vmatprep.mubr.f32.mxu0 0.0
        %691 = vmatmul.mubr.f32.gmra.mrb[0].mxu0 %v621
        %v692 = vpop.f32.mrb[0].mxu0
        %v693 = vadd.f32 %v613, %v692
        %v694 = vpop.f32.mrb[0].mxu0
        %695 = vmatprep.mubr.f32.mxu0 0.0
        %696 = vmatmul.mubr.f32.gmra.mrb[0].mxu0 %v624
        %v697 = vpop.f32.mrb[0].mxu0
        %v698 = vadd.f32 %v618, %v697
        %v699 = vpop.f32.mrb[0].mxu0
        %700 = vdwg.mxu0
        %v701 = vld [vmem:[%s7] sm:$0xff]
        %v702 = vld [vmem:[%s7 + $0x8] sm:$0xff]
        %v703 = vld [vmem:[%s7 + $0x10] sm:$0xff]
        %v704 = vld [vmem:[%s7 + $0x18] sm:$0xff]
        %v705 = vld [vmem:[%s8] sm:$0xff]
        %v706 = vld [vmem:[%s8 + $0x8] sm:$0xff]
        %v707 = vld [vmem:[%s8 + $0x10] sm:$0xff]
        %v708 = vld [vmem:[%s8 + $0x18] sm:$0xff]
        %710 = vset.pattern.permute.xlu0 0
        %711 = vperm.xlu0 %710, %v705
        %v712 = vpop.permute.xlu0 %711
        %715 = vset.pattern.permute.xlu0 0
        %716 = vperm.xlu0 %715, %v706
        %v717 = vpop.permute.xlu0 %716
        %720 = vset.pattern.permute.xlu0 0
        %721 = vperm.xlu0 %720, %v707
        %v722 = vpop.permute.xlu0 %721
        %725 = vset.pattern.permute.xlu0 0
        %726 = vperm.xlu0 %725, %v708
        %v727 = vpop.permute.xlu0 %726
        %vm729 = vcmask 130048
        %v731 = vsel %vm729, %v701, 0
        %v734 = vsel %vm729, %v702, 0
        %v737 = vsel %vm729, %v703, 0
        %v740 = vsel %vm729, %v704, 0
        %742 = vmatprep.subr.mxu0 0.0
        %743 = vmatpush1.msra.mxu0 %v693
        %744 = vmatprep.subr.mxu0 0.0
        %745 = vmatpush1.msra.mxu0 %v698
        %746 = vmatprep.subr.mxu0 0.0
        %747 = vmatpush1.msra.mxu0 0.0
        %748 = vmatprep.subr.mxu0 0.0
        %749 = vmatpush1.msra.mxu0 0.0
        %750 = vmatprep.subr.mxu0 0.0
        %751 = vmatpush1.msra.mxu0 0.0
        %752 = vmatprep.subr.mxu0 0.0
        %753 = vmatpush1.msra.mxu0 0.0
        %754 = vmatprep.subr.mxu0 0.0
        %755 = vmatpush1.msra.mxu0 0.0
        %756 = vmatprep.subr.mxu0 0.0
        %757 = vmatpush1.msra.mxu0 0.0
        %758 = vmatprep.subr.mxu0 0.0
        %759 = vmatpush1.msra.mxu0 0.0
        %760 = vmatprep.subr.mxu0 0.0
        %761 = vmatpush1.msra.mxu0 0.0
        %762 = vmatprep.subr.mxu0 0.0
        %763 = vmatpush1.msra.mxu0 0.0
        %764 = vmatprep.subr.mxu0 0.0
        %765 = vmatpush1.msra.mxu0 0.0
        %766 = vmatprep.subr.mxu0 0.0
        %767 = vmatpush1.msra.mxu0 0.0
        %768 = vmatprep.subr.mxu0 0.0
        %769 = vmatpush1.msra.mxu0 0.0
        %770 = vmatprep.subr.mxu0 0.0
        %771 = vmatpush1.msra.mxu0 0.0
        %772 = vmatprep.subr.mxu0 0.0
        %773 = vmatpush1.msra.mxu0 0.0
        %774 = vmatprep.subr.mxu0 0.0
        %775 = vmatpush1.msra.mxu0 0.0
        %776 = vmatprep.subr.mxu0 0.0
        %777 = vmatpush1.msra.mxu0 0.0
        %778 = vmatprep.subr.mxu0 0.0
        %779 = vmatpush1.msra.mxu0 0.0
        %780 = vmatprep.subr.mxu0 0.0
        %781 = vmatpush1.msra.mxu0 0.0
        %782 = vmatprep.subr.mxu0 0.0
        %783 = vmatpush1.msra.mxu0 0.0
        %784 = vmatprep.subr.mxu0 0.0
        %785 = vmatpush1.msra.mxu0 0.0
        %786 = vmatprep.subr.mxu0 0.0
        %787 = vmatpush1.msra.mxu0 0.0
        %788 = vmatprep.subr.mxu0 0.0
        %789 = vmatpush1.msra.mxu0 0.0
        %790 = vmatprep.subr.mxu0 0.0
        %791 = vmatpush1.msra.mxu0 0.0
        %792 = vmatprep.subr.mxu0 0.0
        %793 = vmatpush1.msra.mxu0 0.0
        %794 = vmatprep.subr.mxu0 0.0
        %795 = vmatpush1.msra.mxu0 0.0
        %796 = vmatprep.subr.mxu0 0.0
        %797 = vmatpush1.msra.mxu0 0.0
        %798 = vmatprep.subr.mxu0 0.0
        %799 = vmatpush1.msra.mxu0 0.0
        %800 = vmatprep.subr.mxu0 0.0
        %801 = vmatpush1.msra.mxu0 0.0
        %802 = vmatprep.subr.mxu0 0.0
        %803 = vmatpush1.msra.mxu0 0.0
        %804 = vmatprep.subr.mxu0 0.0
        %805 = vmatpush1.msra.mxu0 0.0
        %806 = vmatprep.mubr.f32.mxu0 0.0
        %807 = vmatmul.mubr.f32.gmra.mrb[0].mxu0 %v731
        %v808 = vpop.f32.mrb[0].mxu0
        %v809 = vadd.f32 %v712, %v808
        %v810 = vpop.f32.mrb[0].mxu0
        %811 = vmatprep.mubr.f32.mxu0 0.0
        %812 = vmatmul.mubr.f32.gmra.mrb[0].mxu0 %v734
        %v813 = vpop.f32.mrb[0].mxu0
        %v814 = vadd.f32 %v717, %v813
        %v815 = vpop.f32.mrb[0].mxu0
        %816 = vmatprep.mubr.f32.mxu0 0.0
        %817 = vmatmul.mubr.f32.gmra.mrb[0].mxu0 %v737
        %v818 = vpop.f32.mrb[0].mxu0
        %v819 = vadd.f32 %v722, %v818
        %v820 = vpop.f32.mrb[0].mxu0
        %821 = vmatprep.mubr.f32.mxu0 0.0
        %822 = vmatmul.mubr.f32.gmra.mrb[0].mxu0 %v740
        %v823 = vpop.f32.mrb[0].mxu0
        %v824 = vadd.f32 %v727, %v823
        %v825 = vpop.f32.mrb[0].mxu0
        %826 = vdwg.mxu0
        %v827 = vtanh.pop %v809
        %v828 = vtanh.pop %v814
        %v829 = vtanh.pop %v819
        %v830 = vtanh.pop %v824
        %v831 = vld [vmem:[%s9] sm:$0x1]
        %v832 = vld [vmem:[#allocation2] sm:$0x1]
        %834 = vset.pattern.permute.xlu0 0
        %835 = vperm.xlu0 %834, %v832
        %v836 = vpop.permute.xlu0 %835
        %v838 = vlaneseq
        %v839 = vshrl.u32 %v838, 7
        %v840 = vsub.s32 0, %v839
        %v841 = vrot.slane %v836, %v840
        %v843 = vsel %vm504, %v831, 0
        %845 = vmatprep.subr.mxu0 0.0
        %846 = vmatpush1.msra.mxu0 %v827
        %847 = vmatprep.subr.mxu0 0.0
        %848 = vmatpush1.msra.mxu0 %v828
        %849 = vmatprep.subr.mxu0 0.0
        %850 = vmatpush1.msra.mxu0 %v829
        %851 = vmatprep.subr.mxu0 0.0
        %852 = vmatpush1.msra.mxu0 %v830
        %853 = vmatprep.subr.mxu0 0.0
        %854 = vmatpush1.msra.mxu0 0.0
        %855 = vmatprep.subr.mxu0 0.0
        %856 = vmatpush1.msra.mxu0 0.0
        %857 = vmatprep.subr.mxu0 0.0
        %858 = vmatpush1.msra.mxu0 0.0
        %859 = vmatprep.subr.mxu0 0.0
        %860 = vmatpush1.msra.mxu0 0.0
        %861 = vmatprep.subr.mxu0 0.0
        %862 = vmatpush1.msra.mxu0 0.0
        %863 = vmatprep.subr.mxu0 0.0
        %864 = vmatpush1.msra.mxu0 0.0
        %865 = vmatprep.subr.mxu0 0.0
        %866 = vmatpush1.msra.mxu0 0.0
        %867 = vmatprep.subr.mxu0 0.0
        %868 = vmatpush1.msra.mxu0 0.0
        %869 = vmatprep.subr.mxu0 0.0
        %870 = vmatpush1.msra.mxu0 0.0
        %871 = vmatprep.subr.mxu0 0.0
        %872 = vmatpush1.msra.mxu0 0.0
        %873 = vmatprep.subr.mxu0 0.0
        %874 = vmatpush1.msra.mxu0 0.0
        %875 = vmatprep.subr.mxu0 0.0
        %876 = vmatpush1.msra.mxu0 0.0
        %877 = vmatprep.subr.mxu0 0.0
        %878 = vmatpush1.msra.mxu0 0.0
        %879 = vmatprep.subr.mxu0 0.0
        %880 = vmatpush1.msra.mxu0 0.0
        %881 = vmatprep.subr.mxu0 0.0
        %882 = vmatpush1.msra.mxu0 0.0
        %883 = vmatprep.subr.mxu0 0.0
        %884 = vmatpush1.msra.mxu0 0.0
        %885 = vmatprep.subr.mxu0 0.0
        %886 = vmatpush1.msra.mxu0 0.0
        %887 = vmatprep.subr.mxu0 0.0
        %888 = vmatpush1.msra.mxu0 0.0
        %889 = vmatprep.subr.mxu0 0.0
        %890 = vmatpush1.msra.mxu0 0.0
        %891 = vmatprep.subr.mxu0 0.0
        %892 = vmatpush1.msra.mxu0 0.0
        %893 = vmatprep.subr.mxu0 0.0
        %894 = vmatpush1.msra.mxu0 0.0
        %895 = vmatprep.subr.mxu0 0.0
        %896 = vmatpush1.msra.mxu0 0.0
        %897 = vmatprep.subr.mxu0 0.0
        %898 = vmatpush1.msra.mxu0 0.0
        %899 = vmatprep.subr.mxu0 0.0
        %900 = vmatpush1.msra.mxu0 0.0
        %901 = vmatprep.subr.mxu0 0.0
        %902 = vmatpush1.msra.mxu0 0.0
        %903 = vmatprep.subr.mxu0 0.0
        %904 = vmatpush1.msra.mxu0 0.0
        %905 = vmatprep.subr.mxu0 0.0
        %906 = vmatpush1.msra.mxu0 0.0
        %907 = vmatprep.subr.mxu0 0.0
        %908 = vmatpush1.msra.mxu0 0.0
        %909 = vmatprep.mubr.f32.mxu0 0.0
        %910 = vmatmul.mubr.f32.gmra.mrb[0].mxu0 %v843
        %v911 = vpop.f32.mrb[0].mxu0
        %v912 = vadd.f32 %v841, %v911
        %v913 = vpop.f32.mrb[0].mxu0
        %914 = vdwg.mxu0
        %915 = vst [vmem:[%s378] sm:$0x1] %v912
        %s916 = sand.u32 %s271, 1
        %s917 = scalar_lea.sflag [#allocation4], %s916
        %s918 = sand.u32 %s271, 1
        %s919 = scalar_lea.vmem [#allocation3], %s918
        // Predicated region
        $region65: #{tpu_custom_call.1} parent=63 // pred_check
          %p920 = pneg %p281
        $region66: #{tpu_custom_call.1} parent=63 // pred_check_branch
          %922 = sbr.rel (%p920) target = $region68
        $region67: #{tpu_custom_call.1} parent=63 // pred_region
          %s924 = ssub.s32 16, 16
          %925 = vsyncadd %s917, %s924
          %s926 = smul.addr %s27, 16
          %s927 = scalar_lea.hbm %s11, %s926
          %s929 = sshll.u32 %s919, 4
          %s930 = int_to_ptr.vmem [resolvable:$true] %s929
          %932 = dma.vmem_to_hbm [thread:$0]  %s930, 16, %s927, %s917
        $region68: #{tpu_custom_call.1} parent=63 // pred_fallthru
          _
      $region64: #{tpu_custom_call.1} parent=5 // pred_fallthru
        _
      %p933 = scmp.le.s32.totalorder 2, %s22
      // Predicated region
      $region69: #{tpu_custom_call.1} parent=5 // pred_check
        %p934 = pneg %p933
      $region70: #{tpu_custom_call.1} parent=5 // pred_check_branch
        %936 = sbr.rel (%p934) target = $region72
      $region71: #{tpu_custom_call.1} parent=5 // pred_region
        %s937 = ssub.s32 %s22, 2
        // Predicated region
        $region73: #{tpu_custom_call.1} parent=71 // pred_check
          %p938 = pneg %p287
        $region74: #{tpu_custom_call.1} parent=71 // pred_check_branch
          %940 = sbr.rel (%p938) target = $region76
        $region75: #{tpu_custom_call.1} parent=71 // pred_region
          %s941 = sand.u32 %s272, 1
          %s942 = scalar_lea.sflag [#allocation4], %s941
          %s943 = sand.u32 %s272, 1
          %s944 = scalar_lea.vmem [#allocation3], %s943
          %945 = dma.done %s942, 16
        $region76: #{tpu_custom_call.1} parent=71 // pred_fallthru
          _
      $region72: #{tpu_custom_call.1} parent=5 // pred_fallthru
        _
    $region6: #{tpu_custom_call.1} parent=1 // loop_footer
      %s26 = sadd.s32 1, %s22
    $region7: #{tpu_custom_call.1} parent=1 // loop_footer_branch
      %21 = sbr.rel target = $region3
    $region8: #{tpu_custom_call.1} parent=1 // loop_exit
      _
    %946 = vsyncpa [#allocation4], 1
    %s947 = scalar_lea.sflag [#allocation4], 1
    %948 = vsyncpa %s947, 1

</llo_original>
